<compile_context>
chip_gen: v5e
topology: v5e:2x2
jax: 0.10.0
libtpu: 0.0.40
codegen_flags: <defaults>
</compile_context>

<pallas_src>
import math

import jax
import jax.numpy as jnp
from jax.experimental import pallas as pl
from jax.experimental.pallas import tpu as pltpu

# ---- module hyper-parameters (Conv_spa(C_in, 32, 3, stride=1, padding=1, bias=True)) ----
C_IN = 4
C_OUT = 32          # forward() hard-codes the 32 in the output reshape
KSIZE = 3
PAD = 1
STRIDE = 1


def _conv_spa_kernel(x_ref, w_ref, b_ref, o_ref):
    """One lane-dense 2-D matmul per grid step.

    x_ref : (9*C_in, Bt*HWp)  bf16 im2col RHS (column = image*HWp + pixel)
    w_ref : (C_out, 9*C_in)   bf16 flattened conv weight
    b_ref : (C_out, 1)        f32 bias column
    o_ref : (C_out, Bt*HWp)   f32 ReLU(conv) output block
    """
    acc = jax.lax.dot_general(
        w_ref[...], x_ref[...],
        dimension_numbers=(((1,), (0,)), ((), ())),
        preferred_element_type=jnp.float32)               # (C_out, Bt*HWp)
    o_ref[...] = jnp.maximum(acc + b_ref[...], 0.0).astype(o_ref.dtype)


def _pick_bt(B, hw, block_b):
    """Images per grid step: small vreg footprint, >=4 grid steps, low waste."""
    bt = max(1, min(block_b, B, max(1, 4096 // max(hw, 1))))
    # >= 4 grid steps when the batch allows (pipelining + 2 TCs on v7x)
    while bt > 1 and -(-B // bt) < 4:
        bt = max(1, bt // 2)
    # prefer an exact divisor of B (avoid computing then discarding images),
    # but don't shrink the tile by more than 2x to get one.
    d = bt
    while d > 1 and B % d != 0:
        d -= 1
    if d >= max(1, bt // 2):
        bt = d
    return bt


def conv_spa_forward(x, weight, bias, *, block_b=32):
    """x: (N,u,v,c,h,w) f32; weight: (C_out,C_in,K,K); bias: (C_out,)."""
    N, u, v, c, h, w = x.shape
    assert c == C_IN
    B = N * u * v
    hw = h * w
    KK = KSIZE * KSIZE
    R = KK * c                      # contraction length = 36

    bt = _pick_bt(B, hw, block_b)
    nb = -(-B // bt)                # ceil(B / bt)
    Bp = nb * bt

    # Pad per-image column count so each block's lane width (bt*hwp) is a
    # multiple of 128 -> unmasked vst stores for any h, w.
    g = 128 // math.gcd(bt, 128)
    hwp = -(-hw // g) * g
    lw = bt * hwp                   # lane width of one grid block

    # ---- host-side im2col (wrapper-side layout plumbing, not compute) ----
    x4 = x.reshape(B, c, h, w)
    xp = jnp.pad(x4, ((0, Bp - B), (0, 0), (PAD, PAD), (PAD, PAD)))
    taps = [xp[:, :, ky:ky + h, kx:kx + w]
            for ky in range(KSIZE) for kx in range(KSIZE)]        # 9 x (Bp,c,h,w)
    col = jnp.stack(taps, axis=1).reshape(Bp, R, hw)              # (Bp, 36, hw)
    if hwp != hw:
        col = jnp.pad(col, ((0, 0), (0, 0), (0, hwp - hw)))
    # (Bp, 36, hwp) -> (36, Bp*hwp); column index = b*hwp + p
    col = jnp.transpose(col, (1, 0, 2)).reshape(R, Bp * hwp).astype(jnp.bfloat16)

    # weight (C_out, C_in, K, K) -> (C_out, 36), column order (ky, kx, ci)
    # matching the im2col tap order above.
    w2d = jnp.transpose(weight, (0, 2, 3, 1)).reshape(C_OUT, R).astype(jnp.bfloat16)
    b_col = bias.reshape(C_OUT, 1).astype(jnp.float32)

    out2d = pl.pallas_call(
        _conv_spa_kernel,
        out_shape=jax.ShapeDtypeStruct((C_OUT, Bp * hwp), jnp.float32),
        grid_spec=pltpu.PrefetchScalarGridSpec(
            num_scalar_prefetch=0,
            grid=(nb,),
            in_specs=[
                pl.BlockSpec((R, lw), lambda i: (0, i)),
                pl.BlockSpec((C_OUT, R), lambda i: (0, 0)),
                pl.BlockSpec((C_OUT, 1), lambda i: (0, 0)),
            ],
            out_specs=pl.BlockSpec((C_OUT, lw), lambda i: (0, i)),
        ),
        compiler_params=pltpu.CompilerParams(
            dimension_semantics=("parallel",),
            vmem_limit_bytes=32 * 1024 * 1024),
    )(col, w2d, b_col)

    # (32, Bp*hwp) -> (Bp, 32, hw) -> (N, u, v, 32, h, w)
    # TODO(synk): emit bf16 output here if downstream tolerates it (v5e writeback).
    out = out2d.reshape(C_OUT, Bp, hwp)[:, :B, :hw]
    out = jnp.transpose(out, (1, 0, 2)).reshape(N, u, v, C_OUT, h, w)
    return out


def _reference(x, weight, bias):
    """Pure-JAX reference matching the PyTorch module (f32)."""
    N, u, v, c, h, w = x.shape
    xf = x.reshape(N * u * v, c, h, w)
    out = jax.lax.conv_general_dilated(
        xf, weight, window_strides=(STRIDE, STRIDE),
        padding=((PAD, PAD), (PAD, PAD)),
        dimension_numbers=("NCHW", "OIHW", "NCHW"))
    out = out + bias.reshape(1, C_OUT, 1, 1)
    out = jnp.maximum(out, 0.0)
    return out.reshape(N, u, v, C_OUT, h, w)


if __name__ == "__main__":
    key = jax.random.PRNGKey(0)
    k_x, k_w, k_b = jax.random.split(key, 3)

    # small shapes consistent with the module's forward
    N, u, v, c, h, w = 2, 2, 2, C_IN, 16, 16
    x = jax.random.normal(k_x, (N, u, v, c, h, w), dtype=jnp.float32)

    # deterministic synthetic parameters (Conv2d weight: (C_out, C_in, 3, 3), bias: (C_out,))
    fan_in = C_IN * KSIZE * KSIZE
    bound = 1.0 / (fan_in ** 0.5)
    weight = jax.random.uniform(k_w, (C_OUT, C_IN, KSIZE, KSIZE),
                                minval=-bound, maxval=bound, dtype=jnp.float32)
    bias = jax.random.uniform(k_b, (C_OUT,), minval=-bound, maxval=bound,
                              dtype=jnp.float32)

    out = jax.jit(conv_spa_forward)(x, weight, bias)
    out = jax.block_until_ready(out)

    ref = _reference(x, weight, bias)
    assert out.shape == (N, u, v, C_OUT, h, w)
    # bf16 inputs to the MXU (f32 accumulation) -> relaxed tolerance vs f32 ref.
    assert jnp.allclose(out, ref, atol=3e-2, rtol=3e-2)

    print("KERNEL_OK")
</pallas_src>

<mosaic_0001>
module attributes {stable_mosaic.version = 11 : i64} {
  func.func @_conv_spa_kernel(%arg0: i32, %arg1: memref<36x512xbf16, #tpu.memory_space<vmem>>, %arg2: memref<32x36xbf16, #tpu.memory_space<vmem>>, %arg3: memref<32x1xf32, #tpu.memory_space<vmem>>, %arg4: memref<32x512xf32, #tpu.memory_space<vmem>>) attributes {dimension_semantics = [#tpu.dimension_semantics<parallel>], iteration_bounds = array<i64: 4>, scalar_prefetch = 0 : i64, scratch_operands = 0 : i64, tpu.core_type = #tpu.core_type<tc>, window_params = [{transform_indices = @transform_0, window_bounds = array<i64: 36, 512>}, {pipeline_mode = #tpu.pipeline_mode<synchronous>, transform_indices = @transform_1, window_bounds = array<i64: 32, 36>}, {pipeline_mode = #tpu.pipeline_mode<synchronous>, transform_indices = @transform_2, window_bounds = array<i64: 32, 1>}, {transform_indices = @transform_3, window_bounds = array<i64: 32, 512>}]} {
    %c0 = arith.constant 0 : index
    %c0_0 = arith.constant 0 : index
    %0 = vector.load %arg2[%c0, %c0_0] : memref<32x36xbf16, #tpu.memory_space<vmem>>, vector<32x36xbf16>
    %c0_1 = arith.constant 0 : index
    %c0_2 = arith.constant 0 : index
    %1 = vector.load %arg1[%c0_1, %c0_2] : memref<36x512xbf16, #tpu.memory_space<vmem>>, vector<36x512xbf16>
    %cst = arith.constant dense<0.000000e+00> : vector<32x512xf32>
    %2 = tpu.matmul %0, %1, %cst {dimension_numbers = #tpu.dot_dimension_numbers<[1], [0], [0], [1], [0, 0, 1, 1], [], []>} : vector<32x36xbf16>, vector<36x512xbf16>, vector<32x512xf32> -> vector<32x512xf32>
    %c0_3 = arith.constant 0 : index
    %c0_4 = arith.constant 0 : index
    %3 = vector.load %arg3[%c0_3, %c0_4] : memref<32x1xf32, #tpu.memory_space<vmem>>, vector<32x1xf32>
    %4 = vector.broadcast %3 : vector<32x1xf32> to vector<32x512xf32>
    %5 = arith.addf %2, %4 : vector<32x512xf32>
    %cst_5 = arith.constant 0.000000e+00 : f32
    %6 = vector.broadcast %cst_5 : f32 to vector<32x512xf32>
    %7 = arith.maximumf %5, %6 : vector<32x512xf32>
    %c0_6 = arith.constant 0 : index
    %c0_7 = arith.constant 0 : index
    %8 = vector.load %arg4[%c0_6, %c0_7] : memref<32x512xf32, #tpu.memory_space<vmem>>, vector<32x512xf32>
    tpu.vector_store %arg4[%c0_6, %c0_7], %7 {strides = array<i32>} : memref<32x512xf32, #tpu.memory_space<vmem>>, vector<32x512xf32>,
    return
  }
  func.func @transform_0(%arg0: i32) -> (i32, i32) {
    %c0_i32 = arith.constant 0 : i32
    %c0_i32_0 = arith.constant 0 : i32
    return %c0_i32, %arg0 : i32, i32
  }
  func.func @transform_1(%arg0: i32) -> (i32, i32) {
    %c0_i32 = arith.constant 0 : i32
    %c0_i32_0 = arith.constant 0 : i32
    %c0_i32_1 = arith.constant 0 : i32
    return %c0_i32, %c0_i32_0 : i32, i32
  }
  func.func @transform_2(%arg0: i32) -> (i32, i32) {
    %c0_i32 = arith.constant 0 : i32
    %c0_i32_0 = arith.constant 0 : i32
    %c0_i32_1 = arith.constant 0 : i32
    return %c0_i32, %c0_i32_0 : i32, i32
  }
  func.func @transform_3(%arg0: i32) -> (i32, i32) {
    %c0_i32 = arith.constant 0 : i32
    %c0_i32_0 = arith.constant 0 : i32
    return %c0_i32, %arg0 : i32, i32
  }
}

</mosaic_0001>

<llo_original>
// kernel: conv_spa_forward.1
$region0: #{conv_spa_forward.1}
  #allocation0 [shape = 'u32[]', space=smem, size = 0x4, offset = 0x4, fixed_abs, tag = 'smem constant byte address 0x4 - core index']
  #allocation1 [shape = 'u32[72,128]{1,0:T(1,128)}', space=vmem, size = 0x9000, scoped, tag = 'internal scratch']
  %s0 = inlined_call_operand.vmem [shape: bf16[36,2048], index: 0, kind: input, shape index: {}]
  %s1 = inlined_call_operand.vmem [shape: bf16[32,36], index: 1, kind: input, shape index: {}]
  %s2 = inlined_call_operand.vmem [shape: f32[32,1], index: 2, kind: input, shape index: {}]
  %s3 = inlined_call_operand.vmem [shape: f32[32,2048], index: 3, kind: output, shape index: {}]
  %s4 = sld [smem:[#allocation0]]
  $region87: #{conv_spa_forward.1} parent=0
    _
  %s6 = ssub.s32 1, %s4
  %s7 = scalar_select 0, %s6, %s4
  $region1: #{conv_spa_forward.1} parent=0
    #allocation2 [shape = 'u8[81920]{0}', space=vmem, size = 0x14000, scoped, tag = 'input window, operand 0']
    #allocation3 [shape = 'u8[131072]{0}', space=vmem, size = 0x20000, scoped, tag = 'output window, operand 0']
    loop: start=0, step=1, limit=6
    $region2: #{conv_spa_forward.1} parent=1 // loop_pre_header
      _
    $region3: #{conv_spa_forward.1} parent=1 // loop_header
      %s9 = sphi 0, %s13
      %p10 = scmp.ge.s32.totalorder %s9, 6
      %s19 = sphi 0, %s21
      %s22 = sphi 0, %s19
      %s23 = sphi 0, %s22
      %s39 = sphi 0, %s23
      %s43 = sphi 0, %s43
      %s45 = sphi 0, %s43
      %s46 = sphi 0, %s45
      %s60 = sphi 0, %s46
      %s64 = sphi 0, %s64
      %s66 = sphi 0, %s64
      %s67 = sphi 0, %s66
      %s81 = sphi 0, %s67
      %s87 = sphi 0, %s89
      %s90 = sphi 0, %s87
      %s91 = sphi 0, %s90
      %s107 = sphi 0, %s91
    $region4: #{conv_spa_forward.1} parent=1 // loop_header_branch
      %12 = sbr.rel (%p10) target = $region8
    $region5: #{conv_spa_forward.1} parent=1 // loop_body
      %s14 = ssub.s32 %s9, 1
      %s15 = ssub.s32 %s9, 2
      %s16 = sadd.s32 %s9, 1
      %s17 = ssub.s32 %s9, %s16
      %p18 = scmp.eq.s32.totalorder %s17, 0
      %s20 = sadd.s32 %s19, 1
      %s21 = scalar_select %p18, %s19, %s20
      %p24 = pneg %p18
      %p25 = scmp.eq.s32.totalorder %s9, 3
      %p26 = por %p24, %p25
      %p27 = scmp.ne.s32.totalorder %s19, %s22
      %p28 = scmp.eq.s32.totalorder %s9, 0
      %p29 = por %p27, %p28
      %p30 = scmp.ne.s32.totalorder %s19, %s22
      %p31 = scmp.eq.s32.totalorder %s14, 3
      %p32 = por %p30, %p31
      %p33 = scmp.ne.s32.totalorder %s22, %s23
      %p34 = scmp.eq.s32.totalorder %s14, 0
      %p35 = por %p33, %p34
      %p36 = scmp.ne.s32.totalorder %s22, %s23
      %p37 = scmp.eq.s32.totalorder %s15, 3
      %p38 = por %p36, %p37
      %p40 = scmp.ne.s32.totalorder %s23, %s39
      %p41 = scmp.eq.s32.totalorder %s15, 0
      %p42 = por %p40, %p41
      %s44 = sadd.s32 %s43, 1
      %p47 = scmp.eq.s32.totalorder %s9, 3
      %p48 = scmp.ne.s32.totalorder %s43, %s45
      %p49 = scmp.eq.s32.totalorder %s9, 0
      %p50 = por %p48, %p49
      %p51 = scmp.ne.s32.totalorder %s43, %s45
      %p52 = scmp.eq.s32.totalorder %s14, 3
      %p53 = por %p51, %p52
      %p54 = scmp.ne.s32.totalorder %s45, %s46
      %p55 = scmp.eq.s32.totalorder %s14, 0
      %p56 = por %p54, %p55
      %p57 = scmp.ne.s32.totalorder %s45, %s46
      %p58 = scmp.eq.s32.totalorder %s15, 3
      %p59 = por %p57, %p58
      %p61 = scmp.ne.s32.totalorder %s46, %s60
      %p62 = scmp.eq.s32.totalorder %s15, 0
      %p63 = por %p61, %p62
      %s65 = sadd.s32 %s64, 1
      %p68 = scmp.eq.s32.totalorder %s9, 3
      %p69 = scmp.ne.s32.totalorder %s64, %s66
      %p70 = scmp.eq.s32.totalorder %s9, 0
      %p71 = por %p69, %p70
      %p72 = scmp.ne.s32.totalorder %s64, %s66
      %p73 = scmp.eq.s32.totalorder %s14, 3
      %p74 = por %p72, %p73
      %p75 = scmp.ne.s32.totalorder %s66, %s67
      %p76 = scmp.eq.s32.totalorder %s14, 0
      %p77 = por %p75, %p76
      %p78 = scmp.ne.s32.totalorder %s66, %s67
      %p79 = scmp.eq.s32.totalorder %s15, 3
      %p80 = por %p78, %p79
      %p82 = scmp.ne.s32.totalorder %s67, %s81
      %p83 = scmp.eq.s32.totalorder %s15, 0
      %p84 = por %p82, %p83
      %s85 = ssub.s32 %s9, %s16
      %p86 = scmp.eq.s32.totalorder %s85, 0
      %s88 = sadd.s32 %s87, 1
      %s89 = scalar_select %p86, %s87, %s88
      %p92 = pneg %p86
      %p93 = scmp.eq.s32.totalorder %s9, 3
      %p94 = por %p92, %p93
      %p95 = scmp.ne.s32.totalorder %s87, %s90
      %p96 = scmp.eq.s32.totalorder %s9, 0
      %p97 = por %p95, %p96
      %p98 = scmp.ne.s32.totalorder %s87, %s90
      %p99 = scmp.eq.s32.totalorder %s14, 3
      %p100 = por %p98, %p99
      %p101 = scmp.ne.s32.totalorder %s90, %s91
      %p102 = scmp.eq.s32.totalorder %s14, 0
      %p103 = por %p101, %p102
      %p104 = scmp.ne.s32.totalorder %s90, %s91
      %p105 = scmp.eq.s32.totalorder %s15, 3
      %p106 = por %p104, %p105
      %p108 = scmp.ne.s32.totalorder %s91, %s107
      %p109 = scmp.eq.s32.totalorder %s15, 0
      %p110 = por %p108, %p109
      %p111 = scmp.le.s32.totalorder 1, %s9
      %p112 = scmp.lt.s32.totalorder %s9, 5
      %p113 = pnand %p111, %p112
      %p114 = pneg %p113
      // Predicated region
      $region9: #{conv_spa_forward.1} parent=5 // pred_check
        _
      $region10: #{conv_spa_forward.1} parent=5 // pred_check_branch
        %116 = sbr.rel (%p113) target = $region12
      $region11: #{conv_spa_forward.1} parent=5 // pred_region
        %s117 = ssub.s32 %s9, 1
        // Predicated region
        $region13: #{conv_spa_forward.1} parent=11 // pred_check
          %p118 = pneg %p56
        $region14: #{conv_spa_forward.1} parent=11 // pred_check_branch
          %120 = sbr.rel (%p118) target = $region16
        $region15: #{conv_spa_forward.1} parent=11 // pred_region
          _
        $region16: #{conv_spa_forward.1} parent=11 // pred_fallthru
          _
        // Predicated region
        $region17: #{conv_spa_forward.1} parent=11 // pred_check
          %p121 = pneg %p77
        $region18: #{conv_spa_forward.1} parent=11 // pred_check_branch
          %123 = sbr.rel (%p121) target = $region20
        $region19: #{conv_spa_forward.1} parent=11 // pred_region
          _
        $region20: #{conv_spa_forward.1} parent=11 // pred_fallthru
          _
      $region12: #{conv_spa_forward.1} parent=5 // pred_fallthru
        _
      %p124 = scmp.lt.s32.totalorder %s9, 4
      // Predicated region
      $region21: #{conv_spa_forward.1} parent=5 // pred_check
        %p125 = pneg %p124
      $region22: #{conv_spa_forward.1} parent=5 // pred_check_branch
        %127 = sbr.rel (%p125) target = $region24
      $region23: #{conv_spa_forward.1} parent=5 // pred_region
        // Predicated region
        $region25: #{conv_spa_forward.1} parent=23 // pred_check
          %p128 = pneg %p29
        $region26: #{conv_spa_forward.1} parent=23 // pred_check_branch
          %130 = sbr.rel (%p128) target = $region28
        $region27: #{conv_spa_forward.1} parent=23 // pred_region
          %s131 = sand.u32 %s19, 1
          %s132 = sand.u32 %s19, 1
          %s133 = smul.addr %s132, 80
          %s134 = scalar_lea.vmem [#allocation2], %s133
          %s135 = smul.u32 4, %s9
          %s136 = smul.addr %s135, 4
          %s137 = scalar_lea.vmem %s0, %s136
          // Predicated region
          $region29: #{conv_spa_forward.1} parent=27 // pred_check
            _
          $region30: #{conv_spa_forward.1} parent=27 // pred_check_branch
            %139 = sbr.rel (0) target = $region32
          $region31: #{conv_spa_forward.1} parent=27 // pred_region
            // Predicated region
            $region33: #{conv_spa_forward.1} parent=31 // pred_check
              _
            $region34: #{conv_spa_forward.1} parent=31 // pred_check_branch
              %141 = sbr.rel (0) target = $region36
            $region35: #{conv_spa_forward.1} parent=31 // pred_region
              loop: start=0, step=1, limit=1
              $region37: #{conv_spa_forward.1} parent=35 // loop_pre_header
                _
              $region38: #{conv_spa_forward.1} parent=35 // loop_header
                %s143 = sphi 0, %s147
                %p144 = scmp.ge.s32.totalorder %s143, 1
                %s148 = sphi %s137, %s137
                %s149 = sphi %s134, %s134
              $region39: #{conv_spa_forward.1} parent=35 // loop_header_branch
                %146 = sbr.rel (%p144) target = $region43
              $region40: #{conv_spa_forward.1} parent=35 // loop_body
                %v150 = vld [vmem:[%s148] sm:$0xff]
                %151 = vst [vmem:[%s149] sm:$0xff] %v150
                %v152 = vld [vmem:[%s148 + $0x8] sm:$0xff]
                %153 = vst [vmem:[%s149 + $0x8] sm:$0xff] %v152
                %v154 = vld [vmem:[%s148 + $0x40] sm:$0xff]
                %155 = vst [vmem:[%s149 + $0x10] sm:$0xff] %v154
                %v156 = vld [vmem:[%s148 + $0x48] sm:$0xff]
                %157 = vst [vmem:[%s149 + $0x18] sm:$0xff] %v156
                %v158 = vld [vmem:[%s148 + $0x80] sm:$0xff]
                %159 = vst [vmem:[%s149 + $0x20] sm:$0xff] %v158
                %v160 = vld [vmem:[%s148 + $0x88] sm:$0xff]
                %161 = vst [vmem:[%s149 + $0x28] sm:$0xff] %v160
                %v162 = vld [vmem:[%s148 + $0xc0] sm:$0xff]
                %163 = vst [vmem:[%s149 + $0x30] sm:$0xff] %v162
                %v164 = vld [vmem:[%s148 + $0xc8] sm:$0xff]
                %165 = vst [vmem:[%s149 + $0x38] sm:$0xff] %v164
                %v166 = vld [vmem:[%s148 + $0x100] sm:$0xff]
                %167 = vst [vmem:[%s149 + $0x40] sm:$0xff] %v166
                %v168 = vld [vmem:[%s148 + $0x108] sm:$0xff]
                %169 = vst [vmem:[%s149 + $0x48] sm:$0xff] %v168
              $region41: #{conv_spa_forward.1} parent=35 // loop_footer
                %s147 = sadd.s32 1, %s143
              $region42: #{conv_spa_forward.1} parent=35 // loop_footer_branch
                %142 = sbr.rel target = $region38
              $region43: #{conv_spa_forward.1} parent=35 // loop_exit
                _
            $region36: #{conv_spa_forward.1} parent=31 // pred_fallthru
              _
            // Predicated region
            $region44: #{conv_spa_forward.1} parent=31 // pred_check
              _
            $region45: #{conv_spa_forward.1} parent=31 // pred_check_branch
              %171 = sbr.rel target = $region47
            $region46: #{conv_spa_forward.1} parent=31 // pred_region
              _
            $region47: #{conv_spa_forward.1} parent=31 // pred_fallthru
              _
          $region32: #{conv_spa_forward.1} parent=27 // pred_fallthru
            _
          %172 = vnop
        $region28: #{conv_spa_forward.1} parent=23 // pred_fallthru
          _
      $region24: #{conv_spa_forward.1} parent=5 // pred_fallthru
        _
      %p173 = scmp.le.s32.totalorder 1, %s9
      %p174 = scmp.lt.s32.totalorder %s9, 5
      %p175 = pnand %p173, %p174
      %p176 = pneg %p175
      // Predicated region
      $region48: #{conv_spa_forward.1} parent=5 // pred_check
        _
      $region49: #{conv_spa_forward.1} parent=5 // pred_check_branch
        %178 = sbr.rel (%p175) target = $region51
      $region50: #{conv_spa_forward.1} parent=5 // pred_region
        %s179 = ssub.s32 %s9, 1
        %s180 = sand.u32 %s22, 1
        %s181 = sand.u32 %s22, 1
        %s182 = smul.addr %s181, 80
        %s183 = scalar_lea.vmem [#allocation2], %s182
        // Predicated region
        $region52: #{conv_spa_forward.1} parent=50 // pred_check
          %p184 = pneg %p35
        $region53: #{conv_spa_forward.1} parent=50 // pred_check_branch
          %186 = sbr.rel (%p184) target = $region55
        $region54: #{conv_spa_forward.1} parent=50 // pred_region
          _
        $region55: #{conv_spa_forward.1} parent=50 // pred_fallthru
          _
        %s187 = sand.u32 %s22, 1
        %s188 = sand.u32 %s22, 1
        %s189 = smul.addr %s188, 80
        %s190 = scalar_lea.vmem [#allocation2], %s189
        %p191 = pneg %p35
        %p192 = pneg %p32
        %p193 = pneg %p56
        %p194 = pneg %p53
        %p195 = pneg %p77
        %p196 = pneg %p74
        %p197 = pneg %p103
        %p198 = pneg %p100
        %s199 = sand.u32 %s90, 1
        %s200 = sand.u32 %s90, 1
        %s201 = smul.addr %s200, 128
        %s202 = scalar_lea.vmem [#allocation3], %s201
        %s203 = smul.u32 4, %s14
        %s204 = smul.u32 4, %s14
        %v206 = vld [vmem:[%s1] sm:$0xf]
        %v207 = vld [vmem:[%s1 + $0x4] sm:$0xf]
        %v208 = vld [vmem:[%s1 + $0x8] sm:$0xf]
        %v209 = vld [vmem:[%s1 + $0xc] sm:$0xf]
        %v210 = vld [vmem:[%s183] sm:$0xff]
        %v211 = vld [vmem:[%s183 + $0x8] sm:$0xff]
        %v212 = vld [vmem:[%s183 + $0x10] sm:$0xff]
        %v213 = vld [vmem:[%s183 + $0x18] sm:$0xff]
        %v214 = vld [vmem:[%s183 + $0x20] sm:$0xff]
        %v215 = vld [vmem:[%s183 + $0x28] sm:$0xff]
        %v216 = vld [vmem:[%s183 + $0x30] sm:$0xff]
        %v217 = vld [vmem:[%s183 + $0x38] sm:$0xff]
        %v218 = vld [vmem:[%s183 + $0x40] sm:$0x33]
        %v219 = vld [vmem:[%s183 + $0x48] sm:$0x33]
        %v220 = vld [vmem:[%s2] sm:$0xff]
        %v221 = vld [vmem:[%s2 + $0x8] sm:$0xff]
        %v222 = vld [vmem:[%s2 + $0x10] sm:$0xff]
        %v223 = vld [vmem:[%s2 + $0x18] sm:$0xff]
        %225 = vset.pattern.permute.xlu0 0
        %226 = vperm.xlu0 %225, %v220
        %v227 = vpop.permute.xlu0 %226
        %230 = vset.pattern.permute.xlu0 0
        %231 = vperm.xlu0 %230, %v221
        %v232 = vpop.permute.xlu0 %231
        %235 = vset.pattern.permute.xlu0 0
        %236 = vperm.xlu0 %235, %v222
        %v237 = vpop.permute.xlu0 %236
        %240 = vset.pattern.permute.xlu0 0
        %241 = vperm.xlu0 %240, %v223
        %v242 = vpop.permute.xlu0 %241
        %v248 = vunpack.c.l.b16 %v206
        %v249 = vunpack.c.l.b16 %v207
        %v250 = vunpack.c.l.b16 %v208
        %v251 = vunpack.c.l.b16 %v209
        %v252 = vpack.c.b16 %v249, %v248
        %v253 = vpack.c.b16 %v251, %v250
        %v264 = vunpack.c.l.b16 %v210
        %v265 = vunpack.c.h.b16 %v210
        %v266 = vunpack.c.l.b16 %v211
        %v267 = vunpack.c.h.b16 %v211
        %v268 = vunpack.c.l.b16 %v212
        %v269 = vunpack.c.h.b16 %v212
        %v270 = vunpack.c.l.b16 %v213
        %v271 = vunpack.c.h.b16 %v213
        %v272 = vunpack.c.l.b16 %v214
        %v273 = vunpack.c.h.b16 %v214
        %v274 = vunpack.c.l.b16 %v215
        %v275 = vunpack.c.h.b16 %v215
        %v276 = vunpack.c.l.b16 %v216
        %v277 = vunpack.c.h.b16 %v216
        %v278 = vunpack.c.l.b16 %v217
        %v279 = vunpack.c.h.b16 %v217
        %v280 = vunpack.c.l.b16 %v218
        %v281 = vunpack.c.h.b16 %v218
        %v282 = vunpack.c.l.b16 %v219
        %v283 = vunpack.c.h.b16 %v219
        %v284 = vpack.c.b16 %v268, %v264
        %v285 = vpack.c.b16 %v269, %v265
        %v286 = vpack.c.b16 %v270, %v266
        %v287 = vpack.c.b16 %v271, %v267
        %v288 = vpack.c.b16 %v276, %v272
        %v289 = vpack.c.b16 %v277, %v273
        %v290 = vpack.c.b16 %v278, %v274
        %v291 = vpack.c.b16 %v279, %v275
        %v292 = vpack.c.b16 %v280, %v280
        %v293 = vpack.c.b16 %v281, %v281
        %v294 = vpack.c.b16 %v282, %v282
        %v295 = vpack.c.b16 %v283, %v283
        %vm304 = vcmask 293888
        %v306 = vsel %vm304, %v252, 0
        %v309 = vsel %vm304, %v253, 0
        %vm311 = vcmask 1041408
        %v313 = vsel %vm311, %v292, 0
        %v316 = vsel %vm311, %v293, 0
        %v319 = vsel %vm311, %v294, 0
        %v322 = vsel %vm311, %v295, 0
        %324 = vmatpush.bf16.msra.mxu0 0
        %325 = vmatpush.bf16.msra.mxu0 0
        %326 = vmatpush.bf16.msra.mxu0 0
        %327 = vmatpush.bf16.msra.mxu0 0
        %328 = vmatpush.bf16.msra.mxu0 0
        %329 = vmatpush.bf16.msra.mxu0 %v313
        %330 = vmatpush.bf16.msra.mxu0 %v288
        %331 = vmatpush.bf16.msra.mxu0 %v284
        %332 = vmatmul.bf16.gmra.mxu0 %v306
        %v333 = vpop.f32.mrf.mxu0
        %v334 = vadd.f32 %v227, %v333
        %v335 = vpop.f32.mrf.mxu0
        %v336 = vadd.f32 %v232, %v335
        %337 = vmatmul.bf16.gmra.mxu0 %v309
        %v338 = vpop.f32.mrf.mxu0
        %v339 = vadd.f32 %v237, %v338
        %v340 = vpop.f32.mrf.mxu0
        %v341 = vadd.f32 %v242, %v340
        %342 = vdwg.mxu0
        %343 = vmatpush.bf16.msra.mxu0 0
        %344 = vmatpush.bf16.msra.mxu0 0
        %345 = vmatpush.bf16.msra.mxu0 0
        %346 = vmatpush.bf16.msra.mxu0 0
        %347 = vmatpush.bf16.msra.mxu0 0
        %348 = vmatpush.bf16.msra.mxu0 %v316
        %349 = vmatpush.bf16.msra.mxu0 %v289
        %350 = vmatpush.bf16.msra.mxu0 %v285
        %351 = vmatmul.bf16.gmra.mxu0 %v306
        %v352 = vpop.f32.mrf.mxu0
        %v353 = vadd.f32 %v227, %v352
        %v354 = vpop.f32.mrf.mxu0
        %v355 = vadd.f32 %v232, %v354
        %356 = vmatmul.bf16.gmra.mxu0 %v309
        %v357 = vpop.f32.mrf.mxu0
        %v358 = vadd.f32 %v237, %v357
        %v359 = vpop.f32.mrf.mxu0
        %v360 = vadd.f32 %v242, %v359
        %361 = vdwg.mxu0
        %362 = vmatpush.bf16.msra.mxu0 0
        %363 = vmatpush.bf16.msra.mxu0 0
        %364 = vmatpush.bf16.msra.mxu0 0
        %365 = vmatpush.bf16.msra.mxu0 0
        %366 = vmatpush.bf16.msra.mxu0 0
        %367 = vmatpush.bf16.msra.mxu0 %v319
        %368 = vmatpush.bf16.msra.mxu0 %v290
        %369 = vmatpush.bf16.msra.mxu0 %v286
        %370 = vmatmul.bf16.gmra.mxu0 %v306
        %v371 = vpop.f32.mrf.mxu0
        %v372 = vadd.f32 %v227, %v371
        %v373 = vpop.f32.mrf.mxu0
        %v374 = vadd.f32 %v232, %v373
        %375 = vmatmul.bf16.gmra.mxu0 %v309
        %v376 = vpop.f32.mrf.mxu0
        %v377 = vadd.f32 %v237, %v376
        %v378 = vpop.f32.mrf.mxu0
        %v379 = vadd.f32 %v242, %v378
        %380 = vdwg.mxu0
        %381 = vmatpush.bf16.msra.mxu0 0
        %382 = vmatpush.bf16.msra.mxu0 0
        %383 = vmatpush.bf16.msra.mxu0 0
        %384 = vmatpush.bf16.msra.mxu0 0
        %385 = vmatpush.bf16.msra.mxu0 0
        %386 = vmatpush.bf16.msra.mxu0 %v322
        %387 = vmatpush.bf16.msra.mxu0 %v291
        %388 = vmatpush.bf16.msra.mxu0 %v287
        %389 = vmatmul.bf16.gmra.mxu0 %v306
        %v390 = vpop.f32.mrf.mxu0
        %v391 = vadd.f32 %v227, %v390
        %v392 = vpop.f32.mrf.mxu0
        %v393 = vadd.f32 %v232, %v392
        %394 = vmatmul.bf16.gmra.mxu0 %v309
        %v395 = vpop.f32.mrf.mxu0
        %v396 = vadd.f32 %v237, %v395
        %v397 = vpop.f32.mrf.mxu0
        %v398 = vadd.f32 %v242, %v397
        %399 = vdwg.mxu0
        %v400 = vmax.f32 %v334, 0.0
        %v401 = vmax.f32 %v353, 0.0
        %v402 = vmax.f32 %v372, 0.0
        %v403 = vmax.f32 %v391, 0.0
        %v404 = vmax.f32 %v336, 0.0
        %v405 = vmax.f32 %v355, 0.0
        %v406 = vmax.f32 %v374, 0.0
        %v407 = vmax.f32 %v393, 0.0
        %v408 = vmax.f32 %v339, 0.0
        %v409 = vmax.f32 %v358, 0.0
        %v410 = vmax.f32 %v377, 0.0
        %v411 = vmax.f32 %v396, 0.0
        %v412 = vmax.f32 %v341, 0.0
        %v413 = vmax.f32 %v360, 0.0
        %v414 = vmax.f32 %v379, 0.0
        %v415 = vmax.f32 %v398, 0.0
        %416 = vst [vmem:[%s202] sm:$0xff] %v400
        %417 = vst [vmem:[%s202 + $0x8] sm:$0xff] %v401
        %418 = vst [vmem:[%s202 + $0x10] sm:$0xff] %v402
        %419 = vst [vmem:[%s202 + $0x18] sm:$0xff] %v403
        %420 = vst [vmem:[%s202 + $0x20] sm:$0xff] %v404
        %421 = vst [vmem:[%s202 + $0x28] sm:$0xff] %v405
        %422 = vst [vmem:[%s202 + $0x30] sm:$0xff] %v406
        %423 = vst [vmem:[%s202 + $0x38] sm:$0xff] %v407
        %424 = vst [vmem:[%s202 + $0x40] sm:$0xff] %v408
        %425 = vst [vmem:[%s202 + $0x48] sm:$0xff] %v409
        %426 = vst [vmem:[%s202 + $0x50] sm:$0xff] %v410
        %427 = vst [vmem:[%s202 + $0x58] sm:$0xff] %v411
        %428 = vst [vmem:[%s202 + $0x60] sm:$0xff] %v412
        %429 = vst [vmem:[%s202 + $0x68] sm:$0xff] %v413
        %430 = vst [vmem:[%s202 + $0x70] sm:$0xff] %v414
        %431 = vst [vmem:[%s202 + $0x78] sm:$0xff] %v415
        %s432 = sand.u32 %s90, 1
        %s433 = sand.u32 %s90, 1
        %s434 = smul.addr %s433, 128
        %s435 = scalar_lea.vmem [#allocation3], %s434
        // Predicated region
        $region56: #{conv_spa_forward.1} parent=50 // pred_check
          %p436 = pneg %p100
        $region57: #{conv_spa_forward.1} parent=50 // pred_check_branch
          %438 = sbr.rel (%p436) target = $region59
        $region58: #{conv_spa_forward.1} parent=50 // pred_region
          %s439 = smul.u32 4, %s14
          %s440 = smul.addr %s439, 8
          %s441 = scalar_lea.vmem %s3, %s440
          // Predicated region
          $region60: #{conv_spa_forward.1} parent=58 // pred_check
            _
          $region61: #{conv_spa_forward.1} parent=58 // pred_check_branch
            %443 = sbr.rel (0) target = $region63
          $region62: #{conv_spa_forward.1} parent=58 // pred_region
            // Predicated region
            $region64: #{conv_spa_forward.1} parent=62 // pred_check
              _
            $region65: #{conv_spa_forward.1} parent=62 // pred_check_branch
              %445 = sbr.rel (0) target = $region67
            $region66: #{conv_spa_forward.1} parent=62 // pred_region
              loop: start=0, step=1, limit=1
              $region68: #{conv_spa_forward.1} parent=66 // loop_pre_header
                _
              $region69: #{conv_spa_forward.1} parent=66 // loop_header
                %s447 = sphi 0, %s451
                %p448 = scmp.ge.s32.totalorder %s447, 1
                %s452 = sphi %s435, %s435
                %s453 = sphi %s441, %s441
              $region70: #{conv_spa_forward.1} parent=66 // loop_header_branch
                %450 = sbr.rel (%p448) target = $region74
              $region71: #{conv_spa_forward.1} parent=66 // loop_body
                %v454 = vld [vmem:[%s452] sm:$0xff]
                %455 = vst [vmem:[%s453] sm:$0xff] %v454
                %v456 = vld [vmem:[%s452 + $0x8] sm:$0xff]
                %457 = vst [vmem:[%s453 + $0x8] sm:$0xff] %v456
                %v458 = vld [vmem:[%s452 + $0x10] sm:$0xff]
                %459 = vst [vmem:[%s453 + $0x10] sm:$0xff] %v458
                %v460 = vld [vmem:[%s452 + $0x18] sm:$0xff]
                %461 = vst [vmem:[%s453 + $0x18] sm:$0xff] %v460
                %v462 = vld [vmem:[%s452 + $0x20] sm:$0xff]
                %463 = vst [vmem:[%s453 + $0x80] sm:$0xff] %v462
                %v464 = vld [vmem:[%s452 + $0x28] sm:$0xff]
                %465 = vst [vmem:[%s453 + $0x88] sm:$0xff] %v464
                %v466 = vld [vmem:[%s452 + $0x30] sm:$0xff]
                %467 = vst [vmem:[%s453 + $0x90] sm:$0xff] %v466
                %v468 = vld [vmem:[%s452 + $0x38] sm:$0xff]
                %469 = vst [vmem:[%s453 + $0x98] sm:$0xff] %v468
                %v470 = vld [vmem:[%s452 + $0x40] sm:$0xff]
                %471 = vst [vmem:[%s453 + $0x100] sm:$0xff] %v470
                %v472 = vld [vmem:[%s452 + $0x48] sm:$0xff]
                %473 = vst [vmem:[%s453 + $0x108] sm:$0xff] %v472
                %v474 = vld [vmem:[%s452 + $0x50] sm:$0xff]
                %475 = vst [vmem:[%s453 + $0x110] sm:$0xff] %v474
                %v476 = vld [vmem:[%s452 + $0x58] sm:$0xff]
                %477 = vst [vmem:[%s453 + $0x118] sm:$0xff] %v476
                %v478 = vld [vmem:[%s452 + $0x60] sm:$0xff]
                %479 = vst [vmem:[%s453 + $0x180] sm:$0xff] %v478
                %v480 = vld [vmem:[%s452 + $0x68] sm:$0xff]
                %481 = vst [vmem:[%s453 + $0x188] sm:$0xff] %v480
                %v482 = vld [vmem:[%s452 + $0x70] sm:$0xff]
                %483 = vst [vmem:[%s453 + $0x190] sm:$0xff] %v482
                %v484 = vld [vmem:[%s452 + $0x78] sm:$0xff]
                %485 = vst [vmem:[%s453 + $0x198] sm:$0xff] %v484
              $region72: #{conv_spa_forward.1} parent=66 // loop_footer
                %s451 = sadd.s32 1, %s447
              $region73: #{conv_spa_forward.1} parent=66 // loop_footer_branch
                %446 = sbr.rel target = $region69
              $region74: #{conv_spa_forward.1} parent=66 // loop_exit
                _
            $region67: #{conv_spa_forward.1} parent=62 // pred_fallthru
              _
            // Predicated region
            $region75: #{conv_spa_forward.1} parent=62 // pred_check
              _
            $region76: #{conv_spa_forward.1} parent=62 // pred_check_branch
              %487 = sbr.rel target = $region78
            $region77: #{conv_spa_forward.1} parent=62 // pred_region
              _
            $region78: #{conv_spa_forward.1} parent=62 // pred_fallthru
              _
          $region63: #{conv_spa_forward.1} parent=58 // pred_fallthru
            _
          %488 = vnop
        $region59: #{conv_spa_forward.1} parent=50 // pred_fallthru
          _
      $region51: #{conv_spa_forward.1} parent=5 // pred_fallthru
        _
      %p489 = scmp.le.s32.totalorder 2, %s9
      // Predicated region
      $region79: #{conv_spa_forward.1} parent=5 // pred_check
        %p490 = pneg %p489
      $region80: #{conv_spa_forward.1} parent=5 // pred_check_branch
        %492 = sbr.rel (%p490) target = $region82
      $region81: #{conv_spa_forward.1} parent=5 // pred_region
        %s493 = ssub.s32 %s9, 2
        // Predicated region
        $region83: #{conv_spa_forward.1} parent=81 // pred_check
          %p494 = pneg %p106
        $region84: #{conv_spa_forward.1} parent=81 // pred_check_branch
          %496 = sbr.rel (%p494) target = $region86
        $region85: #{conv_spa_forward.1} parent=81 // pred_region
          %s497 = sand.u32 %s91, 1
          %s498 = sand.u32 %s91, 1
          %s499 = smul.addr %s498, 128
          %s500 = scalar_lea.vmem [#allocation3], %s499
        $region86: #{conv_spa_forward.1} parent=81 // pred_fallthru
          _
      $region82: #{conv_spa_forward.1} parent=5 // pred_fallthru
        _
    $region6: #{conv_spa_forward.1} parent=1 // loop_footer
      %s13 = sadd.s32 1, %s9
    $region7: #{conv_spa_forward.1} parent=1 // loop_footer_branch
      %8 = sbr.rel target = $region3
    $region8: #{conv_spa_forward.1} parent=1 // loop_exit
      _

</llo_original>
